<compile_context>
chip_gen: v6e
topology: v6e:2x2x1
jax: 0.10.0
libtpu: 0.0.40
codegen_flags: <defaults>
</compile_context>

<pallas_src>
import functools
import math

import jax
import jax.numpy as jnp
import numpy as np
from jax.experimental import pallas as pl
from jax.experimental.pallas import tpu as pltpu

_LANE = 128
_SUBLANE = 16  # bf16-safe second-to-last-dim multiple (also satisfies f32's 8)


def _round_up(v, m):
    return -(-v // m) * m


def _cdiv(a, b):
    return -(-a // b)


def _vmem_budget_bytes():
    """Generation-aware (tile budget, vmem_limit_bytes).

    64-MiB-VMEM parts (v7x per-TC) -> 40/48 MiB; 128-MiB parts (v5e/v6e) ->
    88/100 MiB.  Falls back to the conservative numbers if the query fails.
    """
    cap = None
    try:
        info = pltpu.get_tpu_info()
        cap = getattr(info, "vmem_capacity_bytes", None)
        if cap is None:
            cap = getattr(info, "vmem_size_bytes", None)
    except Exception:
        cap = None
    if cap is not None and cap > 96 * 1024 * 1024:
        return 88 * 1024 * 1024, 100 * 1024 * 1024
    return 40 * 1024 * 1024, 48 * 1024 * 1024


def _select_row_tile(n, tm_cap, tm_max=512):
    """Balanced row tile: multiple of 16 (128 for large n), >=2 tiles if possible."""
    gran = 128 if n >= 1024 else _SUBLANE
    cap = max(gran, (min(tm_cap, tm_max) // gran) * gran)
    min_steps = 2 if n >= 2 * _SUBLANE else 1          # keep both v7x TCs busy
    steps = max(_cdiv(n, cap), min_steps)
    tm = _round_up(_cdiv(n, steps), gran)
    n_row = _round_up(n, tm)
    return tm, n_row


# ----------------------------- kernel bodies ------------------------------

def _d2_tile(xi_ref, xjT_ref, sqi_ref, sqj_ref):
    # (tm, d) @ (d, tn) on the MXU with f32 accumulation; d2 math on the VPU.
    gram = jax.lax.dot_general(
        xi_ref[...], xjT_ref[...],
        dimension_numbers=(((1,), (0,)), ((), ())),
        preferred_element_type=jnp.float32,
    )
    return (sqi_ref[...] + sqj_ref[...]) - 2.0 * gram


def _fused_kernel(xi_ref, xjT_ref, sqi_ref, sqj_ref, o_ref, *, d2_thr, eps):
    # Single-pass: whole (tm, n_col) row strip resident -> binarize, count,
    # normalize (EUP reciprocal, not a VPU divide), store lane-dense.
    binary = (_d2_tile(xi_ref, xjT_ref, sqi_ref, sqj_ref) < d2_thr).astype(jnp.float32)
    row_sums = jnp.sum(binary, axis=1, keepdims=True)
    inv = pl.reciprocal(row_sums + eps, approx=True)
    o_ref[...] = (binary * inv).astype(o_ref.dtype)


def _count_kernel(xi_ref, xjT_ref, sqi_ref, sqj_ref, cnt_ref, *, d2_thr):
    # Column-tiled pass 1: accumulate per-row hit counts across the column axis.
    @pl.when(pl.program_id(1) == 0)
    def _():
        cnt_ref[...] = jnp.zeros_like(cnt_ref)
    hits = (_d2_tile(xi_ref, xjT_ref, sqi_ref, sqj_ref) < d2_thr).astype(jnp.float32)
    cnt_ref[...] += jnp.sum(hits, axis=1, keepdims=True)


def _write_kernel(xi_ref, xjT_ref, sqi_ref, sqj_ref, cnt_ref, o_ref, *, d2_thr, eps):
    # Column-tiled pass 2: rebinarize and scale by the precomputed 1/count.
    binary = (_d2_tile(xi_ref, xjT_ref, sqi_ref, sqj_ref) < d2_thr).astype(jnp.float32)
    inv = pl.reciprocal(cnt_ref[...] + eps, approx=True)
    o_ref[...] = (binary * inv).astype(o_ref.dtype)


# ------------------------------- wrapper -----------------------------------

def binarized_kernel(x, threshold=0.0, gamma=None, eps=0.0,
                     mxu_dtype=jnp.bfloat16, out_dtype=jnp.bfloat16,
                     column_block=None):
    """Binarized + row-normalized RBF kernel matrix.  x: (N, D) -> (N, N).

    Default is the fast bf16 path (bf16 MXU inputs, bf16 output; rows sum to 1
    only to ~0.4%, and entries with d2 almost exactly at threshold may flip).
    Pass mxu_dtype=out_dtype=jnp.float32 for a bit-faithful result.
    `column_block` forces the column-tiled two-pass path (used automatically
    when a full (tm, N) output strip no longer fits the VMEM budget).
    """
    x = jnp.asarray(x, jnp.float32)
    n, d = x.shape
    if gamma is None:
        gamma = 1.0 / (2.0 * d)

    # exp(-gamma*d2) > threshold  <=>  d2 < -log(threshold)/gamma
    if threshold <= 0.0:
        d2_thr = float("inf")       # everything passes
    elif threshold >= 1.0:
        d2_thr = float("-inf")      # nothing passes (0/0 rows, as in torch)
    else:
        d2_thr = float(-math.log(threshold) / gamma)

    out_bytes = jnp.dtype(out_dtype).itemsize
    mxu_bytes = jnp.dtype(mxu_dtype).itemsize
    budget, vmem_limit = _vmem_budget_bytes()
    n_col0 = _round_up(n, _LANE)

    # ---- tiling decision --------------------------------------------------
    # Single-pass working set: constant blocks single-buffered, per-row tiles
    # (output strip, x rows, norms) double-buffered, x counted at mxu width.
    fixed_single = d * n_col0 * mxu_bytes + n_col0 * 4
    per_row_single = 2 * (n_col0 * out_bytes + d * mxu_bytes + 4)
    tm_cap_single = ((budget - fixed_single) // per_row_single
                     if budget > fixed_single else 0)
    use_single = (column_block is None and
                  tm_cap_single >= min(256, _round_up(n, _SUBLANE)))

    if use_single:
        tm, n_row = _select_row_tile(n, tm_cap_single)
        n_col, tn = n_col0, n_col0
    else:
        desired_tn = int(column_block) if column_block is not None else 2048
        desired_tn = max(_LANE, _round_up(desired_tn, _LANE))
        col_steps = _cdiv(n_col0, desired_tn)
        tn = _round_up(_cdiv(n_col0, col_steps), _LANE)
        n_col = tn * col_steps
        fixed = 2 * (d * tn * mxu_bytes + tn * 4)
        per_row = 2 * (tn * out_bytes + d * mxu_bytes + 8)
        tm_cap = (budget - fixed) // per_row if budget > fixed else _SUBLANE
        tm, n_row = _select_row_tile(n, tm_cap)

    # ---- operand prep (hoisted out of the kernel) ---------------------------
    sq = jnp.sum(x * x, axis=-1, keepdims=True)                     # (n, 1) f32
    xm = x.astype(mxu_dtype)
    x_rows = jnp.pad(xm, ((0, n_row - n), (0, 0)))                  # (n_row, d)
    sq_rows = jnp.pad(sq, ((0, n_row - n), (0, 0)))                 # (n_row, 1)
    x_cols_t = jnp.pad(xm.T, ((0, 0), (0, n_col - n)))              # (d, n_col) lane-dense
    # +inf norm on padded columns => d2 = +inf there => never binarized, so no
    # in-kernel iota/mask is needed (exact even for threshold<=0).
    sq_cols = jnp.pad(sq.T, ((0, 0), (0, n_col - n)),
                      constant_values=float("inf"))                 # (1, n_col)

    if use_single:
        def call(single_buffer_consts):
            col_kw = ({"pipeline_mode": pl.Buffered(1)}
                      if single_buffer_consts else {})
            grid_spec = pltpu.PrefetchScalarGridSpec(
                num_scalar_prefetch=0,
                grid=(n_row // tm,),
                in_specs=[
                    pl.BlockSpec((tm, d), lambda i: (i, 0)),          # x_i rows
                    pl.BlockSpec((d, n_col), lambda i: (0, 0), **col_kw),  # x^T cols
                    pl.BlockSpec((tm, 1), lambda i: (i, 0)),          # ||x_i||^2
                    pl.BlockSpec((1, n_col), lambda i: (0, 0), **col_kw),  # ||x_j||^2
                ],
                out_specs=pl.BlockSpec((tm, n_col), lambda i: (i, 0)),
            )
            return pl.pallas_call(
                functools.partial(_fused_kernel, d2_thr=d2_thr, eps=float(eps)),
                out_shape=jax.ShapeDtypeStruct((n_row, n_col), out_dtype),
                grid_spec=grid_spec,
                compiler_params=pltpu.CompilerParams(
                    dimension_semantics=("parallel",),
                    vmem_limit_bytes=vmem_limit),
            )(x_rows, x_cols_t, sq_rows, sq_cols)

        try:
            out = call(True)      # constant-index blocks single-buffered
        except Exception:
            out = call(False)     # fallback if Buffered(1) is unsupported
        return out[:n, :n]

    # ---- column-tiled two-pass path (large N / forced) ----------------------
    grid = (n_row // tm, n_col // tn)
    base_specs = [
        pl.BlockSpec((tm, d), lambda i, j: (i, 0)),
        pl.BlockSpec((d, tn), lambda i, j: (0, j)),
        pl.BlockSpec((tm, 1), lambda i, j: (i, 0)),
        pl.BlockSpec((1, tn), lambda i, j: (0, j)),
    ]

    counts = pl.pallas_call(
        functools.partial(_count_kernel, d2_thr=d2_thr),
        out_shape=jax.ShapeDtypeStruct((n_row, 1), jnp.float32),
        grid_spec=pltpu.PrefetchScalarGridSpec(
            num_scalar_prefetch=0, grid=grid,
            in_specs=base_specs,
            out_specs=pl.BlockSpec((tm, 1), lambda i, j: (i, 0)),
        ),
        compiler_params=pltpu.CompilerParams(
            dimension_semantics=("parallel", "arbitrary"),
            vmem_limit_bytes=vmem_limit),
    )(x_rows, x_cols_t, sq_rows, sq_cols)

    out = pl.pallas_call(
        functools.partial(_write_kernel, d2_thr=d2_thr, eps=float(eps)),
        out_shape=jax.ShapeDtypeStruct((n_row, n_col), out_dtype),
        grid_spec=pltpu.PrefetchScalarGridSpec(
            num_scalar_prefetch=0, grid=grid,
            in_specs=base_specs + [pl.BlockSpec((tm, 1), lambda i, j: (i, 0))],
            out_specs=pl.BlockSpec((tm, tn), lambda i, j: (i, j)),
        ),
        compiler_params=pltpu.CompilerParams(
            dimension_semantics=("parallel", "parallel"),
            vmem_limit_bytes=vmem_limit),
    )(x_rows, x_cols_t, sq_rows, sq_cols, counts)
    return out[:n, :n]


def binarized_kernel_reference(x, threshold=0.0, gamma=None, eps=0.0):
    """Pure-JAX reference mirroring the PyTorch forward (exp + compare + divide)."""
    x = jnp.asarray(x, jnp.float32)
    n, d = x.shape
    if gamma is None:
        gamma = 1.0 / (2.0 * d)
    sq = jnp.sum(x * x, axis=-1, keepdims=True)
    gram = jnp.dot(x, x.T, precision=jax.lax.Precision.HIGHEST)
    d2 = jnp.maximum(sq + sq.T - 2.0 * gram, 0.0)
    k = jnp.exp(-gamma * d2)
    binary = (k > threshold).astype(jnp.float32)
    row_sums = jnp.sum(binary, axis=1, keepdims=True)
    return binary / (row_sums + eps)


if __name__ == "__main__":
    key = jax.random.PRNGKey(0)
    k1, k2 = jax.random.split(key)

    # Case 1: aligned shapes, fully f32 path -> faithful vs the exp-based reference.
    n1, d1 = 128, 32
    x1 = jax.random.normal(k1, (n1, d1), dtype=jnp.float32)
    out1 = jax.block_until_ready(binarized_kernel(
        x1, threshold=0.6, mxu_dtype=jnp.float32, out_dtype=jnp.float32))
    ref1 = binarized_kernel_reference(x1, threshold=0.6)
    np.testing.assert_allclose(np.asarray(out1), np.asarray(ref1), rtol=5e-3, atol=1e-5)
    np.testing.assert_allclose(np.asarray(out1).sum(axis=1), np.ones(n1), atol=5e-3)

    # Case 2: unaligned shapes (row/column padding, +inf column-norm masking), f32 path.
    n2, d2 = 200, 48
    x2 = jax.random.normal(k2, (n2, d2), dtype=jnp.float32)
    out2 = jax.block_until_ready(binarized_kernel(
        x2, threshold=0.6, mxu_dtype=jnp.float32, out_dtype=jnp.float32))
    ref2 = binarized_kernel_reference(x2, threshold=0.6)
    np.testing.assert_allclose(np.asarray(out2), np.asarray(ref2), rtol=5e-3, atol=1e-5)
    np.testing.assert_allclose(np.asarray(out2).sum(axis=1), np.ones(n2), atol=5e-3)

    # Case 3: PyTorch default threshold=0.0 -> all-ones rows (padded-column handling).
    out0 = jax.block_until_ready(binarized_kernel(
        x2, threshold=0.0, mxu_dtype=jnp.float32, out_dtype=jnp.float32))
    np.testing.assert_allclose(np.asarray(out0), np.full((n2, n2), 1.0 / n2), rtol=5e-3)

    # Case 4: column-tiled two-pass path (large-N structure), forced via column_block.
    out4 = jax.block_until_ready(binarized_kernel(
        x2, threshold=0.6, mxu_dtype=jnp.float32, out_dtype=jnp.float32,
        column_block=128))
    np.testing.assert_allclose(np.asarray(out4), np.asarray(ref2), rtol=5e-3, atol=1e-5)

    # Case 5: default fast path (bf16 MXU inputs + bf16 output) -- smoke test.
    out5 = jax.block_until_ready(binarized_kernel(x2, threshold=0.6))
    row_sums = np.asarray(jnp.sum(out5.astype(jnp.float32), axis=1))
    np.testing.assert_allclose(row_sums, np.ones(n2), atol=2e-2)

    print("KERNEL_OK")
</pallas_src>

<mosaic_0001>
module attributes {stable_mosaic.version = 11 : i64} {
  func.func @_fused_kernel(%arg0: i32, %arg1: memref<64x32xf32, #tpu.memory_space<vmem>>, %arg2: memref<32x128xf32, #tpu.memory_space<vmem>>, %arg3: memref<64x1xf32, #tpu.memory_space<vmem>>, %arg4: memref<1x128xf32, #tpu.memory_space<vmem>>, %arg5: memref<64x128xf32, #tpu.memory_space<vmem>>) attributes {dimension_semantics = [#tpu.dimension_semantics<parallel>], iteration_bounds = array<i64: 2>, scalar_prefetch = 0 : i64, scratch_operands = 0 : i64, tpu.core_type = #tpu.core_type<tc>, window_params = [{transform_indices = @transform_0, window_bounds = array<i64: 64, 32>}, {pipeline_mode = #tpu.pipeline_mode<synchronous>, transform_indices = @transform_1, window_bounds = array<i64: 32, 128>}, {transform_indices = @transform_2, window_bounds = array<i64: 64, 1>}, {pipeline_mode = #tpu.pipeline_mode<synchronous>, transform_indices = @transform_3, window_bounds = array<i64: 1, 128>}, {transform_indices = @transform_4, window_bounds = array<i64: 64, 128>}]} {
    %c0 = arith.constant 0 : index
    %c0_0 = arith.constant 0 : index
    %0 = vector.load %arg1[%c0, %c0_0] : memref<64x32xf32, #tpu.memory_space<vmem>>, vector<64x32xf32>
    %c0_1 = arith.constant 0 : index
    %c0_2 = arith.constant 0 : index
    %1 = vector.load %arg2[%c0_1, %c0_2] : memref<32x128xf32, #tpu.memory_space<vmem>>, vector<32x128xf32>
    %cst = arith.constant dense<0.000000e+00> : vector<64x128xf32>
    %2 = tpu.matmul %0, %1, %cst {dimension_numbers = #tpu.dot_dimension_numbers<[1], [0], [0], [1], [0, 0, 1, 1], [], []>} : vector<64x32xf32>, vector<32x128xf32>, vector<64x128xf32> -> vector<64x128xf32>
    %c0_3 = arith.constant 0 : index
    %c0_4 = arith.constant 0 : index
    %3 = vector.load %arg3[%c0_3, %c0_4] : memref<64x1xf32, #tpu.memory_space<vmem>>, vector<64x1xf32>
    %c0_5 = arith.constant 0 : index
    %c0_6 = arith.constant 0 : index
    %4 = vector.load %arg4[%c0_5, %c0_6] : memref<1x128xf32, #tpu.memory_space<vmem>>, vector<1x128xf32>
    %5 = vector.broadcast %3 : vector<64x1xf32> to vector<64x128xf32>
    %6 = vector.broadcast %4 : vector<1x128xf32> to vector<64x128xf32>
    %7 = arith.addf %5, %6 : vector<64x128xf32>
    %cst_7 = arith.constant 2.000000e+00 : f32
    %8 = vector.broadcast %cst_7 : f32 to vector<64x128xf32>
    %9 = arith.mulf %8, %2 : vector<64x128xf32>
    %10 = arith.subf %7, %9 : vector<64x128xf32>
    %cst_8 = arith.constant 32.6928406 : f32
    %11 = vector.broadcast %cst_8 : f32 to vector<64x128xf32>
    %12 = arith.cmpf olt, %10, %11 : vector<64x128xf32>
    %13 = arith.extui %12 : vector<64x128xi1> to vector<64x128xi32>
    %14 = arith.sitofp %13 : vector<64x128xi32> to vector<64x128xf32>
    %cst_9 = arith.constant dense<0.000000e+00> : vector<64xf32>
    %15 = vector.multi_reduction <add>, %14, %cst_9 [1] : vector<64x128xf32> to vector<64xf32>
    %16 = vector.shape_cast %15 : vector<64xf32> to vector<64x1xf32>
    %cst_10 = arith.constant 0.000000e+00 : f32
    %17 = vector.broadcast %cst_10 : f32 to vector<64x1xf32>
    %18 = arith.addf %16, %17 : vector<64x1xf32>
    %19 = tpu.reciprocal %18 {approx = true} : vector<64x1xf32> -> vector<64x1xf32>
    %20 = vector.broadcast %19 : vector<64x1xf32> to vector<64x128xf32>
    %21 = arith.mulf %14, %20 : vector<64x128xf32>
    %c0_11 = arith.constant 0 : index
    %c0_12 = arith.constant 0 : index
    %22 = vector.load %arg5[%c0_11, %c0_12] : memref<64x128xf32, #tpu.memory_space<vmem>>, vector<64x128xf32>
    tpu.vector_store %arg5[%c0_11, %c0_12], %21 {strides = array<i32>} : memref<64x128xf32, #tpu.memory_space<vmem>>, vector<64x128xf32>,
    return
  }
  func.func @transform_0(%arg0: i32) -> (i32, i32) {
    %c0_i32 = arith.constant 0 : i32
    %c0_i32_0 = arith.constant 0 : i32
    return %arg0, %c0_i32 : i32, i32
  }
  func.func @transform_1(%arg0: i32) -> (i32, i32) {
    %c0_i32 = arith.constant 0 : i32
    %c0_i32_0 = arith.constant 0 : i32
    %c0_i32_1 = arith.constant 0 : i32
    return %c0_i32, %c0_i32_0 : i32, i32
  }
  func.func @transform_2(%arg0: i32) -> (i32, i32) {
    %c0_i32 = arith.constant 0 : i32
    %c0_i32_0 = arith.constant 0 : i32
    return %arg0, %c0_i32 : i32, i32
  }
  func.func @transform_3(%arg0: i32) -> (i32, i32) {
    %c0_i32 = arith.constant 0 : i32
    %c0_i32_0 = arith.constant 0 : i32
    %c0_i32_1 = arith.constant 0 : i32
    return %c0_i32, %c0_i32_0 : i32, i32
  }
  func.func @transform_4(%arg0: i32) -> (i32, i32) {
    %c0_i32 = arith.constant 0 : i32
    %c0_i32_0 = arith.constant 0 : i32
    return %arg0, %c0_i32 : i32, i32
  }
}

module attributes {stable_mosaic.version = 11 : i64} {
  func.func @_fused_kernel(%arg0: i32, %arg1: memref<64x32xf32, #tpu.memory_space<vmem>>, %arg2: memref<32x128xf32, #tpu.memory_space<vmem>>, %arg3: memref<64x1xf32, #tpu.memory_space<vmem>>, %arg4: memref<1x128xf32, #tpu.memory_space<vmem>>, %arg5: memref<64x128xf32, #tpu.memory_space<vmem>>) attributes {dimension_semantics = [#tpu.dimension_semantics<parallel>], iteration_bounds = array<i64: 2>, scalar_prefetch = 0 : i64, scratch_operands = 0 : i64, tpu.core_type = #tpu.core_type<tc>, window_params = [{transform_indices = @transform_0, window_bounds = array<i64: 64, 32>}, {pipeline_mode = #tpu.pipeline_mode<synchronous>, transform_indices = @transform_1, window_bounds = array<i64: 32, 128>}, {transform_indices = @transform_2, window_bounds = array<i64: 64, 1>}, {pipeline_mode = #tpu.pipeline_mode<synchronous>, transform_indices = @transform_3, window_bounds = array<i64: 1, 128>}, {transform_indices = @transform_4, window_bounds = array<i64: 64, 128>}]} {
    %c0 = arith.constant 0 : index
    %c0_0 = arith.constant 0 : index
    %0 = vector.load %arg1[%c0, %c0_0] : memref<64x32xf32, #tpu.memory_space<vmem>>, vector<64x32xf32>
    %c0_1 = arith.constant 0 : index
    %c0_2 = arith.constant 0 : index
    %1 = vector.load %arg2[%c0_1, %c0_2] : memref<32x128xf32, #tpu.memory_space<vmem>>, vector<32x128xf32>
    %cst = arith.constant dense<0.000000e+00> : vector<64x128xf32>
    %2 = tpu.matmul %0, %1, %cst {dimension_numbers = #tpu.dot_dimension_numbers<[1], [0], [0], [1], [0, 0, 1, 1], [], []>} : vector<64x32xf32>, vector<32x128xf32>, vector<64x128xf32> -> vector<64x128xf32>
    %c0_3 = arith.constant 0 : index
    %c0_4 = arith.constant 0 : index
    %3 = vector.load %arg3[%c0_3, %c0_4] : memref<64x1xf32, #tpu.memory_space<vmem>>, vector<64x1xf32>
    %c0_5 = arith.constant 0 : index
    %c0_6 = arith.constant 0 : index
    %4 = vector.load %arg4[%c0_5, %c0_6] : memref<1x128xf32, #tpu.memory_space<vmem>>, vector<1x128xf32>
    %5 = vector.broadcast %3 : vector<64x1xf32> to vector<64x128xf32>
    %6 = vector.broadcast %4 : vector<1x128xf32> to vector<64x128xf32>
    %7 = arith.addf %5, %6 : vector<64x128xf32>
    %cst_7 = arith.constant 2.000000e+00 : f32
    %8 = vector.broadcast %cst_7 : f32 to vector<64x128xf32>
    %9 = arith.mulf %8, %2 : vector<64x128xf32>
    %10 = arith.subf %7, %9 : vector<64x128xf32>
    %cst_8 = arith.constant 32.6928406 : f32
    %11 = vector.broadcast %cst_8 : f32 to vector<64x128xf32>
    %12 = arith.cmpf olt, %10, %11 : vector<64x128xf32>
    %13 = arith.extui %12 : vector<64x128xi1> to vector<64x128xi32>
    %14 = arith.sitofp %13 : vector<64x128xi32> to vector<64x128xf32>
    %cst_9 = arith.constant dense<0.000000e+00> : vector<64xf32>
    %15 = vector.multi_reduction <add>, %14, %cst_9 [1] : vector<64x128xf32> to vector<64xf32>
    %16 = vector.shape_cast %15 : vector<64xf32> to vector<64x1xf32>
    %cst_10 = arith.constant 0.000000e+00 : f32
    %17 = vector.broadcast %cst_10 : f32 to vector<64x1xf32>
    %18 = arith.addf %16, %17 : vector<64x1xf32>
    %19 = tpu.reciprocal %18 {approx = true} : vector<64x1xf32> -> vector<64x1xf32>
    %20 = vector.broadcast %19 : vector<64x1xf32> to vector<64x128xf32>
    %21 = arith.mulf %14, %20 : vector<64x128xf32>
    %c0_11 = arith.constant 0 : index
    %c0_12 = arith.constant 0 : index
    %22 = vector.load %arg5[%c0_11, %c0_12] : memref<64x128xf32, #tpu.memory_space<vmem>>, vector<64x128xf32>
    tpu.vector_store %arg5[%c0_11, %c0_12], %21 {strides = array<i32>} : memref<64x128xf32, #tpu.memory_space<vmem>>, vector<64x128xf32>,
    return
  }
  func.func @transform_0(%arg0: i32) -> (i32, i32) {
    %c0_i32 = arith.constant 0 : i32
    %c0_i32_0 = arith.constant 0 : i32
    return %arg0, %c0_i32 : i32, i32
  }
  func.func @transform_1(%arg0: i32) -> (i32, i32) {
    %c0_i32 = arith.constant 0 : i32
    %c0_i32_0 = arith.constant 0 : i32
    %c0_i32_1 = arith.constant 0 : i32
    return %c0_i32, %c0_i32_0 : i32, i32
  }
  func.func @transform_2(%arg0: i32) -> (i32, i32) {
    %c0_i32 = arith.constant 0 : i32
    %c0_i32_0 = arith.constant 0 : i32
    return %arg0, %c0_i32 : i32, i32
  }
  func.func @transform_3(%arg0: i32) -> (i32, i32) {
    %c0_i32 = arith.constant 0 : i32
    %c0_i32_0 = arith.constant 0 : i32
    %c0_i32_1 = arith.constant 0 : i32
    return %c0_i32, %c0_i32_0 : i32, i32
  }
  func.func @transform_4(%arg0: i32) -> (i32, i32) {
    %c0_i32 = arith.constant 0 : i32
    %c0_i32_0 = arith.constant 0 : i32
    return %arg0, %c0_i32 : i32, i32
  }
}

</mosaic_0001>

<llo_original>
// kernel: tpu_custom_call.1
$region0: #{tpu_custom_call.1}
  #allocation0 [shape = 'u32[]', space=smem, size = 0x4, offset = 0x4, fixed_abs, tag = 'smem constant byte address 0x4 - core index']
  #allocation1 [shape = 'u32[144,128]{1,0:T(1,128)}', space=vmem, size = 0x12000, scoped, tag = 'internal scratch']
  %s0 = inlined_call_operand.vmem [shape: f32[128,32], index: 0, kind: input, shape index: {}]
  %s1 = inlined_call_operand.vmem [shape: f32[32,128], index: 1, kind: input, shape index: {}]
  %s2 = inlined_call_operand.vmem [shape: f32[128,1], index: 2, kind: input, shape index: {}]
  %s3 = inlined_call_operand.vmem [shape: f32[1,128], index: 3, kind: input, shape index: {}]
  %s4 = inlined_call_operand.hbm [shape: f32[128,128], index: 4, kind: output, shape index: {}]
  %s5 = sld [smem:[#allocation0]]
  $region49: #{tpu_custom_call.1} parent=0
    _
  %s7 = ssub.s32 1, %s5
  %s8 = scalar_select 0, %s7, %s5
  $region1: #{tpu_custom_call.1} parent=0
    #allocation2 [shape = 'u8[65536]{0}', space=vmem, size = 0x10000, scoped, tag = 'output window, operand 0']
    #allocation3 [shape = 's32[2]{0}', space=sflag, size = 0x8, scoped, tag = 'scoped memory for tpu_custom_call.1']
    %9 = vsyncpa [#allocation3], 0
    %s10 = scalar_lea.sflag [#allocation3], 1
    %11 = vsyncpa %s10, 0
    loop: start=0, step=1, limit=4
    $region2: #{tpu_custom_call.1} parent=1 // loop_pre_header
      _
    $region3: #{tpu_custom_call.1} parent=1 // loop_header
      %s13 = sphi 0, %s17
      %p14 = scmp.ge.s32.totalorder %s13, 4
      %s23 = sphi 0, %s25
      %s26 = sphi 0, %s23
      %s27 = sphi 0, %s26
      %s43 = sphi 0, %s27
      %s47 = sphi 0, %s47
      %s49 = sphi 0, %s47
      %s50 = sphi 0, %s49
      %s64 = sphi 0, %s50
      %s70 = sphi 0, %s72
      %s73 = sphi 0, %s70
      %s74 = sphi 0, %s73
      %s90 = sphi 0, %s74
      %s94 = sphi 0, %s94
      %s96 = sphi 0, %s94
      %s97 = sphi 0, %s96
      %s111 = sphi 0, %s97
      %s117 = sphi 0, %s119
      %s120 = sphi 0, %s117
      %s121 = sphi 0, %s120
      %s137 = sphi 0, %s121
    $region4: #{tpu_custom_call.1} parent=1 // loop_header_branch
      %16 = sbr.rel (%p14) target = $region8
    $region5: #{tpu_custom_call.1} parent=1 // loop_body
      %s18 = ssub.s32 %s13, 1
      %s19 = ssub.s32 %s13, 2
      %s20 = sadd.s32 %s13, 1
      %s21 = ssub.s32 %s13, %s20
      %p22 = scmp.eq.s32.totalorder %s21, 0
      %s24 = sadd.s32 %s23, 1
      %s25 = scalar_select %p22, %s23, %s24
      %p28 = pneg %p22
      %p29 = scmp.eq.s32.totalorder %s13, 1
      %p30 = por %p28, %p29
      %p31 = scmp.ne.s32.totalorder %s23, %s26
      %p32 = scmp.eq.s32.totalorder %s13, 0
      %p33 = por %p31, %p32
      %p34 = scmp.ne.s32.totalorder %s23, %s26
      %p35 = scmp.eq.s32.totalorder %s18, 1
      %p36 = por %p34, %p35
      %p37 = scmp.ne.s32.totalorder %s26, %s27
      %p38 = scmp.eq.s32.totalorder %s18, 0
      %p39 = por %p37, %p38
      %p40 = scmp.ne.s32.totalorder %s26, %s27
      %p41 = scmp.eq.s32.totalorder %s19, 1
      %p42 = por %p40, %p41
      %p44 = scmp.ne.s32.totalorder %s27, %s43
      %p45 = scmp.eq.s32.totalorder %s19, 0
      %p46 = por %p44, %p45
      %s48 = sadd.s32 %s47, 1
      %p51 = scmp.eq.s32.totalorder %s13, 1
      %p52 = scmp.ne.s32.totalorder %s47, %s49
      %p53 = scmp.eq.s32.totalorder %s13, 0
      %p54 = por %p52, %p53
      %p55 = scmp.ne.s32.totalorder %s47, %s49
      %p56 = scmp.eq.s32.totalorder %s18, 1
      %p57 = por %p55, %p56
      %p58 = scmp.ne.s32.totalorder %s49, %s50
      %p59 = scmp.eq.s32.totalorder %s18, 0
      %p60 = por %p58, %p59
      %p61 = scmp.ne.s32.totalorder %s49, %s50
      %p62 = scmp.eq.s32.totalorder %s19, 1
      %p63 = por %p61, %p62
      %p65 = scmp.ne.s32.totalorder %s50, %s64
      %p66 = scmp.eq.s32.totalorder %s19, 0
      %p67 = por %p65, %p66
      %s68 = ssub.s32 %s13, %s20
      %p69 = scmp.eq.s32.totalorder %s68, 0
      %s71 = sadd.s32 %s70, 1
      %s72 = scalar_select %p69, %s70, %s71
      %p75 = pneg %p69
      %p76 = scmp.eq.s32.totalorder %s13, 1
      %p77 = por %p75, %p76
      %p78 = scmp.ne.s32.totalorder %s70, %s73
      %p79 = scmp.eq.s32.totalorder %s13, 0
      %p80 = por %p78, %p79
      %p81 = scmp.ne.s32.totalorder %s70, %s73
      %p82 = scmp.eq.s32.totalorder %s18, 1
      %p83 = por %p81, %p82
      %p84 = scmp.ne.s32.totalorder %s73, %s74
      %p85 = scmp.eq.s32.totalorder %s18, 0
      %p86 = por %p84, %p85
      %p87 = scmp.ne.s32.totalorder %s73, %s74
      %p88 = scmp.eq.s32.totalorder %s19, 1
      %p89 = por %p87, %p88
      %p91 = scmp.ne.s32.totalorder %s74, %s90
      %p92 = scmp.eq.s32.totalorder %s19, 0
      %p93 = por %p91, %p92
      %s95 = sadd.s32 %s94, 1
      %p98 = scmp.eq.s32.totalorder %s13, 1
      %p99 = scmp.ne.s32.totalorder %s94, %s96
      %p100 = scmp.eq.s32.totalorder %s13, 0
      %p101 = por %p99, %p100
      %p102 = scmp.ne.s32.totalorder %s94, %s96
      %p103 = scmp.eq.s32.totalorder %s18, 1
      %p104 = por %p102, %p103
      %p105 = scmp.ne.s32.totalorder %s96, %s97
      %p106 = scmp.eq.s32.totalorder %s18, 0
      %p107 = por %p105, %p106
      %p108 = scmp.ne.s32.totalorder %s96, %s97
      %p109 = scmp.eq.s32.totalorder %s19, 1
      %p110 = por %p108, %p109
      %p112 = scmp.ne.s32.totalorder %s97, %s111
      %p113 = scmp.eq.s32.totalorder %s19, 0
      %p114 = por %p112, %p113
      %s115 = ssub.s32 %s13, %s20
      %p116 = scmp.eq.s32.totalorder %s115, 0
      %s118 = sadd.s32 %s117, 1
      %s119 = scalar_select %p116, %s117, %s118
      %p122 = pneg %p116
      %p123 = scmp.eq.s32.totalorder %s13, 1
      %p124 = por %p122, %p123
      %p125 = scmp.ne.s32.totalorder %s117, %s120
      %p126 = scmp.eq.s32.totalorder %s13, 0
      %p127 = por %p125, %p126
      %p128 = scmp.ne.s32.totalorder %s117, %s120
      %p129 = scmp.eq.s32.totalorder %s18, 1
      %p130 = por %p128, %p129
      %p131 = scmp.ne.s32.totalorder %s120, %s121
      %p132 = scmp.eq.s32.totalorder %s18, 0
      %p133 = por %p131, %p132
      %p134 = scmp.ne.s32.totalorder %s120, %s121
      %p135 = scmp.eq.s32.totalorder %s19, 1
      %p136 = por %p134, %p135
      %p138 = scmp.ne.s32.totalorder %s121, %s137
      %p139 = scmp.eq.s32.totalorder %s19, 0
      %p140 = por %p138, %p139
      %p141 = scmp.le.s32.totalorder 1, %s13
      %p142 = scmp.lt.s32.totalorder %s13, 3
      %p143 = pnand %p141, %p142
      %p144 = pneg %p143
      // Predicated region
      $region9: #{tpu_custom_call.1} parent=5 // pred_check
        _
      $region10: #{tpu_custom_call.1} parent=5 // pred_check_branch
        %146 = sbr.rel (%p143) target = $region12
      $region11: #{tpu_custom_call.1} parent=5 // pred_region
        %s147 = ssub.s32 %s13, 1
        // Predicated region
        $region13: #{tpu_custom_call.1} parent=11 // pred_check
          %p148 = pneg %p60
        $region14: #{tpu_custom_call.1} parent=11 // pred_check_branch
          %150 = sbr.rel (%p148) target = $region16
        $region15: #{tpu_custom_call.1} parent=11 // pred_region
          _
        $region16: #{tpu_custom_call.1} parent=11 // pred_fallthru
          _
        // Predicated region
        $region17: #{tpu_custom_call.1} parent=11 // pred_check
          %p151 = pneg %p107
        $region18: #{tpu_custom_call.1} parent=11 // pred_check_branch
          %153 = sbr.rel (%p151) target = $region20
        $region19: #{tpu_custom_call.1} parent=11 // pred_region
          _
        $region20: #{tpu_custom_call.1} parent=11 // pred_fallthru
          _
      $region12: #{tpu_custom_call.1} parent=5 // pred_fallthru
        _
      %p154 = scmp.lt.s32.totalorder %s13, 2
      // Predicated region
      $region21: #{tpu_custom_call.1} parent=5 // pred_check
        %p155 = pneg %p154
      $region22: #{tpu_custom_call.1} parent=5 // pred_check_branch
        %157 = sbr.rel (%p155) target = $region24
      $region23: #{tpu_custom_call.1} parent=5 // pred_region
        // Predicated region
        $region25: #{tpu_custom_call.1} parent=23 // pred_check
          %p158 = pneg %p33
        $region26: #{tpu_custom_call.1} parent=23 // pred_check_branch
          %160 = sbr.rel (%p158) target = $region28
        $region27: #{tpu_custom_call.1} parent=23 // pred_region
          %s161 = smul.u32 8, %s13
          %p162 = scmp.lt.s32.totalorder %s161, 15
          %s163 = scalar_select %p162, %s161, 15
          %s164 = smul.addr %s163, 8
          %s165 = scalar_lea.vmem %s0, %s164
          %s166 = smul.u32 8, %s13
        $region28: #{tpu_custom_call.1} parent=23 // pred_fallthru
          _
        // Predicated region
        $region29: #{tpu_custom_call.1} parent=23 // pred_check
          %p167 = pneg %p80
        $region30: #{tpu_custom_call.1} parent=23 // pred_check_branch
          %169 = sbr.rel (%p167) target = $region32
        $region31: #{tpu_custom_call.1} parent=23 // pred_region
          %s170 = smul.u32 8, %s13
          %p171 = scmp.lt.s32.totalorder %s170, 15
          %s172 = scalar_select %p171, %s170, 15
          %s173 = smul.addr %s172, 8
          %s174 = scalar_lea.vmem %s2, %s173
          %s175 = smul.u32 8, %s13
        $region32: #{tpu_custom_call.1} parent=23 // pred_fallthru
          _
      $region24: #{tpu_custom_call.1} parent=5 // pred_fallthru
        _
      %p176 = scmp.le.s32.totalorder 1, %s13
      %p177 = scmp.lt.s32.totalorder %s13, 3
      %p178 = pnand %p176, %p177
      %p179 = pneg %p178
      // Predicated region
      $region33: #{tpu_custom_call.1} parent=5 // pred_check
        _
      $region34: #{tpu_custom_call.1} parent=5 // pred_check_branch
        %181 = sbr.rel (%p178) target = $region36
      $region35: #{tpu_custom_call.1} parent=5 // pred_region
        %s182 = ssub.s32 %s13, 1
        %s183 = smul.u32 8, %s18
        %p184 = scmp.lt.s32.totalorder %s183, 15
        %s185 = scalar_select %p184, %s183, 15
        %s186 = smul.addr %s185, 8
        %s187 = scalar_lea.vmem %s0, %s186
        %p188 = pneg %p39
        %p189 = pneg %p36
        %p190 = pneg %p60
        %p191 = pneg %p57
        %s192 = smul.u32 8, %s18
        %p193 = scmp.lt.s32.totalorder %s192, 15
        %s194 = scalar_select %p193, %s192, 15
        %s195 = smul.addr %s194, 8
        %s196 = scalar_lea.vmem %s2, %s195
        %p197 = pneg %p86
        %p198 = pneg %p83
        %p199 = pneg %p107
        %p200 = pneg %p104
        %p201 = pneg %p133
        %p202 = pneg %p130
        %s203 = sand.u32 %s120, 1
        %s204 = scalar_lea.sflag [#allocation3], %s203
        %s205 = sand.u32 %s120, 1
        %s206 = smul.addr %s205, 64
        %s207 = scalar_lea.vmem [#allocation2], %s206
        %s208 = smul.u32 8, %s18
        %p209 = scmp.lt.s32.totalorder %s208, 15
        %s210 = scalar_select %p209, %s208, 15
        %s211 = smul.addr %s210, 8
        %s212 = scalar_lea.vmem %s0, %s211
        %s213 = smul.u32 8, %s18
        %s214 = smul.u32 8, %s18
        %p215 = scmp.lt.s32.totalorder %s214, 15
        %s216 = scalar_select %p215, %s214, 15
        %s217 = smul.addr %s216, 8
        %s218 = scalar_lea.vmem %s2, %s217
        %s219 = smul.u32 8, %s18
        %s220 = smul.u32 8, %s18
        %v221 = vld [vmem:[%s212] sm:$0xff]
        %v222 = vld [vmem:[%s212 + $0x8] sm:$0xff]
        %v223 = vld [vmem:[%s212 + $0x10] sm:$0xff]
        %v224 = vld [vmem:[%s212 + $0x18] sm:$0xff]
        %v225 = vld [vmem:[%s212 + $0x20] sm:$0xff]
        %v226 = vld [vmem:[%s212 + $0x28] sm:$0xff]
        %v227 = vld [vmem:[%s212 + $0x30] sm:$0xff]
        %v228 = vld [vmem:[%s212 + $0x38] sm:$0xff]
        %v229 = vld [vmem:[%s1] sm:$0xff]
        %v230 = vld [vmem:[%s1 + $0x8] sm:$0xff]
        %v231 = vld [vmem:[%s1 + $0x10] sm:$0xff]
        %v232 = vld [vmem:[%s1 + $0x18] sm:$0xff]
        %vm233 = vcmask 261120
        %v235 = vsel %vm233, %v221, 0
        %v238 = vsel %vm233, %v222, 0
        %v241 = vsel %vm233, %v223, 0
        %v244 = vsel %vm233, %v224, 0
        %v247 = vsel %vm233, %v225, 0
        %v250 = vsel %vm233, %v226, 0
        %v253 = vsel %vm233, %v227, 0
        %v256 = vsel %vm233, %v228, 0
        %258 = vmatprep.subr.mxu0 0.0
        %259 = vmatpush1.msra.mxu0 0.0
        %260 = vmatprep.subr.mxu0 0.0
        %261 = vmatpush1.msra.mxu0 0.0
        %262 = vmatprep.subr.mxu0 0.0
        %263 = vmatpush1.msra.mxu0 0.0
        %264 = vmatprep.subr.mxu0 0.0
        %265 = vmatpush1.msra.mxu0 0.0
        %266 = vmatprep.subr.mxu0 0.0
        %267 = vmatpush1.msra.mxu0 0.0
        %268 = vmatprep.subr.mxu0 0.0
        %269 = vmatpush1.msra.mxu0 0.0
        %270 = vmatprep.subr.mxu0 0.0
        %271 = vmatpush1.msra.mxu0 0.0
        %272 = vmatprep.subr.mxu0 0.0
        %273 = vmatpush1.msra.mxu0 0.0
        %274 = vmatprep.subr.mxu0 0.0
        %275 = vmatpush1.msra.mxu0 0.0
        %276 = vmatprep.subr.mxu0 0.0
        %277 = vmatpush1.msra.mxu0 0.0
        %278 = vmatprep.subr.mxu0 0.0
        %279 = vmatpush1.msra.mxu0 0.0
        %280 = vmatprep.subr.mxu0 0.0
        %281 = vmatpush1.msra.mxu0 0.0
        %282 = vmatprep.subr.mxu0 0.0
        %283 = vmatpush1.msra.mxu0 %v232
        %284 = vmatprep.subr.mxu0 0.0
        %285 = vmatpush1.msra.mxu0 %v231
        %286 = vmatprep.subr.mxu0 0.0
        %287 = vmatpush1.msra.mxu0 %v230
        %288 = vmatprep.subr.mxu0 0.0
        %289 = vmatpush1.msra.mxu0 %v229
        %290 = vmatprep.subr.mxu0 0.0
        %291 = vmatpush2.msra.mxu0 0.0
        %292 = vmatprep.subr.mxu0 0.0
        %293 = vmatpush2.msra.mxu0 0.0
        %294 = vmatprep.subr.mxu0 0.0
        %295 = vmatpush2.msra.mxu0 0.0
        %296 = vmatprep.subr.mxu0 0.0
        %297 = vmatpush2.msra.mxu0 0.0
        %298 = vmatprep.subr.mxu0 0.0
        %299 = vmatpush2.msra.mxu0 0.0
        %300 = vmatprep.subr.mxu0 0.0
        %301 = vmatpush2.msra.mxu0 0.0
        %302 = vmatprep.subr.mxu0 0.0
        %303 = vmatpush2.msra.mxu0 0.0
        %304 = vmatprep.subr.mxu0 0.0
        %305 = vmatpush2.msra.mxu0 0.0
        %306 = vmatprep.subr.mxu0 0.0
        %307 = vmatpush2.msra.mxu0 0.0
        %308 = vmatprep.subr.mxu0 0.0
        %309 = vmatpush2.msra.mxu0 0.0
        %310 = vmatprep.subr.mxu0 0.0
        %311 = vmatpush2.msra.mxu0 0.0
        %312 = vmatprep.subr.mxu0 0.0
        %313 = vmatpush2.msra.mxu0 0.0
        %314 = vmatprep.subr.mxu0 0.0
        %315 = vmatpush2.msra.mxu0 0.0
        %316 = vmatprep.subr.mxu0 0.0
        %317 = vmatpush2.msra.mxu0 0.0
        %318 = vmatprep.subr.mxu0 0.0
        %319 = vmatpush2.msra.mxu0 0.0
        %320 = vmatprep.subr.mxu0 0.0
        %321 = vmatpush2.msra.mxu0 0.0
        %322 = vmatprep.mubr.f32.mxu0 0.0
        %323 = vmatmul.mubr.f32.gmra.mxu0 %v235
        %v324 = vpop.f32.mrf.mxu0
        %v325 = vadd.f32 0.0, %v324
        %v326 = vpop.f32.mrf.mxu0
        %327 = vmatprep.mubr.f32.mxu0 0.0
        %328 = vmatmul.mubr.f32.gmra.mxu0 %v238
        %v329 = vpop.f32.mrf.mxu0
        %v330 = vadd.f32 0.0, %v329
        %v331 = vpop.f32.mrf.mxu0
        %332 = vmatprep.mubr.f32.mxu0 0.0
        %333 = vmatmul.mubr.f32.gmra.mxu0 %v241
        %v334 = vpop.f32.mrf.mxu0
        %v335 = vadd.f32 0.0, %v334
        %v336 = vpop.f32.mrf.mxu0
        %337 = vmatprep.mubr.f32.mxu0 0.0
        %338 = vmatmul.mubr.f32.gmra.mxu0 %v244
        %v339 = vpop.f32.mrf.mxu0
        %v340 = vadd.f32 0.0, %v339
        %v341 = vpop.f32.mrf.mxu0
        %342 = vmatprep.mubr.f32.mxu0 0.0
        %343 = vmatmul.mubr.f32.gmra.mxu0 %v247
        %v344 = vpop.f32.mrf.mxu0
        %v345 = vadd.f32 0.0, %v344
        %v346 = vpop.f32.mrf.mxu0
        %347 = vmatprep.mubr.f32.mxu0 0.0
        %348 = vmatmul.mubr.f32.gmra.mxu0 %v250
        %v349 = vpop.f32.mrf.mxu0
        %v350 = vadd.f32 0.0, %v349
        %v351 = vpop.f32.mrf.mxu0
        %352 = vmatprep.mubr.f32.mxu0 0.0
        %353 = vmatmul.mubr.f32.gmra.mxu0 %v253
        %v354 = vpop.f32.mrf.mxu0
        %v355 = vadd.f32 0.0, %v354
        %v356 = vpop.f32.mrf.mxu0
        %357 = vmatprep.mubr.f32.mxu0 0.0
        %358 = vmatmul.mubr.f32.gmra.mxu0 %v256
        %v359 = vpop.f32.mrf.mxu0
        %v360 = vadd.f32 0.0, %v359
        %v361 = vpop.f32.mrf.mxu0
        %362 = vdwg.mxu0
        %v363 = vld [vmem:[%s218] sm:$0xff]
        %v364 = vld [vmem:[%s218 + $0x8] sm:$0xff]
        %v365 = vld [vmem:[%s218 + $0x10] sm:$0xff]
        %v366 = vld [vmem:[%s218 + $0x18] sm:$0xff]
        %v367 = vld [vmem:[%s218 + $0x20] sm:$0xff]
        %v368 = vld [vmem:[%s218 + $0x28] sm:$0xff]
        %v369 = vld [vmem:[%s218 + $0x30] sm:$0xff]
        %v370 = vld [vmem:[%s218 + $0x38] sm:$0xff]
        %v371 = vld [vmem:[%s3] sm:$0x1]
        %373 = vset.pattern.permute.xlu0 0
        %374 = vperm.xlu0 %373, %v363
        %v375 = vpop.permute.xlu0 %374
        %378 = vset.pattern.permute.xlu0 0
        %379 = vperm.xlu0 %378, %v364
        %v380 = vpop.permute.xlu0 %379
        %383 = vset.pattern.permute.xlu0 0
        %384 = vperm.xlu0 %383, %v365
        %v385 = vpop.permute.xlu0 %384
        %388 = vset.pattern.permute.xlu0 0
        %389 = vperm.xlu0 %388, %v366
        %v390 = vpop.permute.xlu0 %389
        %393 = vset.pattern.permute.xlu0 0
        %394 = vperm.xlu0 %393, %v367
        %v395 = vpop.permute.xlu0 %394
        %398 = vset.pattern.permute.xlu0 0
        %399 = vperm.xlu0 %398, %v368
        %v400 = vpop.permute.xlu0 %399
        %403 = vset.pattern.permute.xlu0 0
        %404 = vperm.xlu0 %403, %v369
        %v405 = vpop.permute.xlu0 %404
        %408 = vset.pattern.permute.xlu0 0
        %409 = vperm.xlu0 %408, %v370
        %v410 = vpop.permute.xlu0 %409
        %v413 = vlaneseq
        %v414 = vshrl.u32 %v413, 7
        %v415 = vsub.s32 0, %v414
        %v416 = vrot.slane %v371, %v415
        %v418 = vadd.f32 %v375, %v416
        %v419 = vadd.f32 %v380, %v416
        %v420 = vadd.f32 %v385, %v416
        %v421 = vadd.f32 %v390, %v416
        %v422 = vadd.f32 %v395, %v416
        %v423 = vadd.f32 %v400, %v416
        %v424 = vadd.f32 %v405, %v416
        %v425 = vadd.f32 %v410, %v416
        %v426 = vmul.f32 %v325, 2.0
        %v427 = vmul.f32 %v330, 2.0
        %v428 = vmul.f32 %v335, 2.0
        %v429 = vmul.f32 %v340, 2.0
        %v430 = vmul.f32 %v345, 2.0
        %v431 = vmul.f32 %v350, 2.0
        %v432 = vmul.f32 %v355, 2.0
        %v433 = vmul.f32 %v360, 2.0
        %v434 = vsub.f32 %v418, %v426
        %v435 = vsub.f32 %v419, %v427
        %v436 = vsub.f32 %v420, %v428
        %v437 = vsub.f32 %v421, %v429
        %v438 = vsub.f32 %v422, %v430
        %v439 = vsub.f32 %v423, %v431
        %v440 = vsub.f32 %v424, %v432
        %v441 = vsub.f32 %v425, %v433
        %vm442 = vcmp.lt.f32.partialorder %v434, 32.69284
        %vm443 = vcmp.lt.f32.partialorder %v435, 32.69284
        %vm444 = vcmp.lt.f32.partialorder %v436, 32.69284
        %vm445 = vcmp.lt.f32.partialorder %v437, 32.69284
        %vm446 = vcmp.lt.f32.partialorder %v438, 32.69284
        %vm447 = vcmp.lt.f32.partialorder %v439, 32.69284
        %vm448 = vcmp.lt.f32.partialorder %v440, 32.69284
        %vm449 = vcmp.lt.f32.partialorder %v441, 32.69284
        %v450 = vsel %vm442, 1, 0
        %v451 = vsel %vm443, 1, 0
        %v452 = vsel %vm444, 1, 0
        %v453 = vsel %vm445, 1, 0
        %v454 = vsel %vm446, 1, 0
        %v455 = vsel %vm447, 1, 0
        %v456 = vsel %vm448, 1, 0
        %v457 = vsel %vm449, 1, 0
        %v458 = vcvt.s32.f32 %v450
        %v459 = vcvt.s32.f32 %v451
        %v460 = vcvt.s32.f32 %v452
        %v461 = vcvt.s32.f32 %v453
        %v462 = vcvt.s32.f32 %v454
        %v463 = vcvt.s32.f32 %v455
        %v464 = vcvt.s32.f32 %v456
        %v465 = vcvt.s32.f32 %v457
        %466 = vadd.xlane.f32.xlu0 %v458
        %v467 = vpop.xlane.xlu0 %466
        %468 = vadd.xlane.f32.xlu0 %v459
        %v469 = vpop.xlane.xlu0 %468
        %470 = vadd.xlane.f32.xlu0 %v460
        %v471 = vpop.xlane.xlu0 %470
        %472 = vadd.xlane.f32.xlu0 %v461
        %v473 = vpop.xlane.xlu0 %472
        %474 = vadd.xlane.f32.xlu0 %v462
        %v475 = vpop.xlane.xlu0 %474
        %476 = vadd.xlane.f32.xlu0 %v463
        %v477 = vpop.xlane.xlu0 %476
        %478 = vadd.xlane.f32.xlu0 %v464
        %v479 = vpop.xlane.xlu0 %478
        %480 = vadd.xlane.f32.xlu0 %v465
        %v481 = vpop.xlane.xlu0 %480
        %v482 = vadd.f32 %v467, 0.0
        %v483 = vadd.f32 %v469, 0.0
        %v484 = vadd.f32 %v471, 0.0
        %v485 = vadd.f32 %v473, 0.0
        %v486 = vadd.f32 %v475, 0.0
        %v487 = vadd.f32 %v477, 0.0
        %v488 = vadd.f32 %v479, 0.0
        %v489 = vadd.f32 %v481, 0.0
        %v490 = vrcp.pop %v482
        %v491 = vrcp.pop %v483
        %v492 = vrcp.pop %v484
        %v493 = vrcp.pop %v485
        %v494 = vrcp.pop %v486
        %v495 = vrcp.pop %v487
        %v496 = vrcp.pop %v488
        %v497 = vrcp.pop %v489
        %v498 = vmul.f32 %v458, %v490
        %v499 = vmul.f32 %v459, %v491
        %v500 = vmul.f32 %v460, %v492
        %v501 = vmul.f32 %v461, %v493
        %v502 = vmul.f32 %v462, %v494
        %v503 = vmul.f32 %v463, %v495
        %v504 = vmul.f32 %v464, %v496
        %v505 = vmul.f32 %v465, %v497
        %506 = vst [vmem:[%s207] sm:$0xff] %v498
        %507 = vst [vmem:[%s207 + $0x8] sm:$0xff] %v499
        %508 = vst [vmem:[%s207 + $0x10] sm:$0xff] %v500
        %509 = vst [vmem:[%s207 + $0x18] sm:$0xff] %v501
        %510 = vst [vmem:[%s207 + $0x20] sm:$0xff] %v502
        %511 = vst [vmem:[%s207 + $0x28] sm:$0xff] %v503
        %512 = vst [vmem:[%s207 + $0x30] sm:$0xff] %v504
        %513 = vst [vmem:[%s207 + $0x38] sm:$0xff] %v505
        %s514 = sand.u32 %s120, 1
        %s515 = scalar_lea.sflag [#allocation3], %s514
        %s516 = sand.u32 %s120, 1
        %s517 = smul.addr %s516, 64
        %s518 = scalar_lea.vmem [#allocation2], %s517
        // Predicated region
        $region37: #{tpu_custom_call.1} parent=35 // pred_check
          %p519 = pneg %p130
        $region38: #{tpu_custom_call.1} parent=35 // pred_check_branch
          %521 = sbr.rel (%p519) target = $region40
        $region39: #{tpu_custom_call.1} parent=35 // pred_region
          %s522 = smul.u32 8, %s18
          %s524 = ssub.s32 1024, 1024
          %525 = vsyncadd %s515, %s524
          %s526 = smul.addr %s522, 128
          %s527 = scalar_lea.hbm %s4, %s526
          %s528 = sshll.u32 %s518, 4
          %s529 = int_to_ptr.vmem [resolvable:$true] %s528
          %534 = dma.vmem_to_hbm [thread:$0]  %s529, 1024, %s527, %s515, 128, 128, 8
        $region40: #{tpu_custom_call.1} parent=35 // pred_fallthru
          _
      $region36: #{tpu_custom_call.1} parent=5 // pred_fallthru
        _
      %p535 = scmp.le.s32.totalorder 2, %s13
      // Predicated region
      $region41: #{tpu_custom_call.1} parent=5 // pred_check
        %p536 = pneg %p535
      $region42: #{tpu_custom_call.1} parent=5 // pred_check_branch
        %538 = sbr.rel (%p536) target = $region44
      $region43: #{tpu_custom_call.1} parent=5 // pred_region
        %s539 = ssub.s32 %s13, 2
        // Predicated region
        $region45: #{tpu_custom_call.1} parent=43 // pred_check
          %p540 = pneg %p136
        $region46: #{tpu_custom_call.1} parent=43 // pred_check_branch
          %542 = sbr.rel (%p540) target = $region48
        $region47: #{tpu_custom_call.1} parent=43 // pred_region
          %s543 = sand.u32 %s121, 1
          %s544 = scalar_lea.sflag [#allocation3], %s543
          %s545 = sand.u32 %s121, 1
          %s546 = smul.addr %s545, 64
          %s547 = scalar_lea.vmem [#allocation2], %s546
          %548 = dma.done %s544, 1024
        $region48: #{tpu_custom_call.1} parent=43 // pred_fallthru
          _
      $region44: #{tpu_custom_call.1} parent=5 // pred_fallthru
        _
    $region6: #{tpu_custom_call.1} parent=1 // loop_footer
      %s17 = sadd.s32 1, %s13
    $region7: #{tpu_custom_call.1} parent=1 // loop_footer_branch
      %12 = sbr.rel target = $region3
    $region8: #{tpu_custom_call.1} parent=1 // loop_exit
      _
    %549 = vsyncpa [#allocation3], 1
    %s550 = scalar_lea.sflag [#allocation3], 1
    %551 = vsyncpa %s550, 1

// kernel: tpu_custom_call.1
$region0: #{tpu_custom_call.1}
  #allocation0 [shape = 'u32[]', space=smem, size = 0x4, offset = 0x4, fixed_abs, tag = 'smem constant byte address 0x4 - core index']
  #allocation1 [shape = 'u32[144,128]{1,0:T(1,128)}', space=vmem, size = 0x12000, scoped, tag = 'internal scratch']
  %s0 = inlined_call_operand.vmem [shape: f32[128,32], index: 0, kind: input, shape index: {}]
  %s1 = inlined_call_operand.vmem [shape: f32[32,128], index: 1, kind: input, shape index: {}]
  %s2 = inlined_call_operand.vmem [shape: f32[128,1], index: 2, kind: input, shape index: {}]
  %s3 = inlined_call_operand.vmem [shape: f32[1,128], index: 3, kind: input, shape index: {}]
  %s4 = inlined_call_operand.hbm [shape: f32[128,128], index: 4, kind: output, shape index: {}]
  %s5 = sld [smem:[#allocation0]]
  $region49: #{tpu_custom_call.1} parent=0
    _
  %s7 = ssub.s32 1, %s5
  %s8 = scalar_select 0, %s7, %s5
  $region1: #{tpu_custom_call.1} parent=0
    #allocation2 [shape = 'u8[65536]{0}', space=vmem, size = 0x10000, scoped, tag = 'output window, operand 0']
    #allocation3 [shape = 's32[2]{0}', space=sflag, size = 0x8, scoped, tag = 'scoped memory for tpu_custom_call.1']
    %9 = vsyncpa [#allocation3], 0
    %s10 = scalar_lea.sflag [#allocation3], 1
    %11 = vsyncpa %s10, 0
    loop: start=0, step=1, limit=4
    $region2: #{tpu_custom_call.1} parent=1 // loop_pre_header
      _
    $region3: #{tpu_custom_call.1} parent=1 // loop_header
      %s13 = sphi 0, %s17
      %p14 = scmp.ge.s32.totalorder %s13, 4
      %s23 = sphi 0, %s25
      %s26 = sphi 0, %s23
      %s27 = sphi 0, %s26
      %s43 = sphi 0, %s27
      %s47 = sphi 0, %s47
      %s49 = sphi 0, %s47
      %s50 = sphi 0, %s49
      %s64 = sphi 0, %s50
      %s70 = sphi 0, %s72
      %s73 = sphi 0, %s70
      %s74 = sphi 0, %s73
      %s90 = sphi 0, %s74
      %s94 = sphi 0, %s94
      %s96 = sphi 0, %s94
      %s97 = sphi 0, %s96
      %s111 = sphi 0, %s97
      %s117 = sphi 0, %s119
      %s120 = sphi 0, %s117
      %s121 = sphi 0, %s120
      %s137 = sphi 0, %s121
    $region4: #{tpu_custom_call.1} parent=1 // loop_header_branch
      %16 = sbr.rel (%p14) target = $region8
    $region5: #{tpu_custom_call.1} parent=1 // loop_body
      %s18 = ssub.s32 %s13, 1
      %s19 = ssub.s32 %s13, 2
      %s20 = sadd.s32 %s13, 1
      %s21 = ssub.s32 %s13, %s20
      %p22 = scmp.eq.s32.totalorder %s21, 0
      %s24 = sadd.s32 %s23, 1
      %s25 = scalar_select %p22, %s23, %s24
      %p28 = pneg %p22
      %p29 = scmp.eq.s32.totalorder %s13, 1
      %p30 = por %p28, %p29
      %p31 = scmp.ne.s32.totalorder %s23, %s26
      %p32 = scmp.eq.s32.totalorder %s13, 0
      %p33 = por %p31, %p32
      %p34 = scmp.ne.s32.totalorder %s23, %s26
      %p35 = scmp.eq.s32.totalorder %s18, 1
      %p36 = por %p34, %p35
      %p37 = scmp.ne.s32.totalorder %s26, %s27
      %p38 = scmp.eq.s32.totalorder %s18, 0
      %p39 = por %p37, %p38
      %p40 = scmp.ne.s32.totalorder %s26, %s27
      %p41 = scmp.eq.s32.totalorder %s19, 1
      %p42 = por %p40, %p41
      %p44 = scmp.ne.s32.totalorder %s27, %s43
      %p45 = scmp.eq.s32.totalorder %s19, 0
      %p46 = por %p44, %p45
      %s48 = sadd.s32 %s47, 1
      %p51 = scmp.eq.s32.totalorder %s13, 1
      %p52 = scmp.ne.s32.totalorder %s47, %s49
      %p53 = scmp.eq.s32.totalorder %s13, 0
      %p54 = por %p52, %p53
      %p55 = scmp.ne.s32.totalorder %s47, %s49
      %p56 = scmp.eq.s32.totalorder %s18, 1
      %p57 = por %p55, %p56
      %p58 = scmp.ne.s32.totalorder %s49, %s50
      %p59 = scmp.eq.s32.totalorder %s18, 0
      %p60 = por %p58, %p59
      %p61 = scmp.ne.s32.totalorder %s49, %s50
      %p62 = scmp.eq.s32.totalorder %s19, 1
      %p63 = por %p61, %p62
      %p65 = scmp.ne.s32.totalorder %s50, %s64
      %p66 = scmp.eq.s32.totalorder %s19, 0
      %p67 = por %p65, %p66
      %s68 = ssub.s32 %s13, %s20
      %p69 = scmp.eq.s32.totalorder %s68, 0
      %s71 = sadd.s32 %s70, 1
      %s72 = scalar_select %p69, %s70, %s71
      %p75 = pneg %p69
      %p76 = scmp.eq.s32.totalorder %s13, 1
      %p77 = por %p75, %p76
      %p78 = scmp.ne.s32.totalorder %s70, %s73
      %p79 = scmp.eq.s32.totalorder %s13, 0
      %p80 = por %p78, %p79
      %p81 = scmp.ne.s32.totalorder %s70, %s73
      %p82 = scmp.eq.s32.totalorder %s18, 1
      %p83 = por %p81, %p82
      %p84 = scmp.ne.s32.totalorder %s73, %s74
      %p85 = scmp.eq.s32.totalorder %s18, 0
      %p86 = por %p84, %p85
      %p87 = scmp.ne.s32.totalorder %s73, %s74
      %p88 = scmp.eq.s32.totalorder %s19, 1
      %p89 = por %p87, %p88
      %p91 = scmp.ne.s32.totalorder %s74, %s90
      %p92 = scmp.eq.s32.totalorder %s19, 0
      %p93 = por %p91, %p92
      %s95 = sadd.s32 %s94, 1
      %p98 = scmp.eq.s32.totalorder %s13, 1
      %p99 = scmp.ne.s32.totalorder %s94, %s96
      %p100 = scmp.eq.s32.totalorder %s13, 0
      %p101 = por %p99, %p100
      %p102 = scmp.ne.s32.totalorder %s94, %s96
      %p103 = scmp.eq.s32.totalorder %s18, 1
      %p104 = por %p102, %p103
      %p105 = scmp.ne.s32.totalorder %s96, %s97
      %p106 = scmp.eq.s32.totalorder %s18, 0
      %p107 = por %p105, %p106
      %p108 = scmp.ne.s32.totalorder %s96, %s97
      %p109 = scmp.eq.s32.totalorder %s19, 1
      %p110 = por %p108, %p109
      %p112 = scmp.ne.s32.totalorder %s97, %s111
      %p113 = scmp.eq.s32.totalorder %s19, 0
      %p114 = por %p112, %p113
      %s115 = ssub.s32 %s13, %s20
      %p116 = scmp.eq.s32.totalorder %s115, 0
      %s118 = sadd.s32 %s117, 1
      %s119 = scalar_select %p116, %s117, %s118
      %p122 = pneg %p116
      %p123 = scmp.eq.s32.totalorder %s13, 1
      %p124 = por %p122, %p123
      %p125 = scmp.ne.s32.totalorder %s117, %s120
      %p126 = scmp.eq.s32.totalorder %s13, 0
      %p127 = por %p125, %p126
      %p128 = scmp.ne.s32.totalorder %s117, %s120
      %p129 = scmp.eq.s32.totalorder %s18, 1
      %p130 = por %p128, %p129
      %p131 = scmp.ne.s32.totalorder %s120, %s121
      %p132 = scmp.eq.s32.totalorder %s18, 0
      %p133 = por %p131, %p132
      %p134 = scmp.ne.s32.totalorder %s120, %s121
      %p135 = scmp.eq.s32.totalorder %s19, 1
      %p136 = por %p134, %p135
      %p138 = scmp.ne.s32.totalorder %s121, %s137
      %p139 = scmp.eq.s32.totalorder %s19, 0
      %p140 = por %p138, %p139
      %p141 = scmp.le.s32.totalorder 1, %s13
      %p142 = scmp.lt.s32.totalorder %s13, 3
      %p143 = pnand %p141, %p142
      %p144 = pneg %p143
      // Predicated region
      $region9: #{tpu_custom_call.1} parent=5 // pred_check
        _
      $region10: #{tpu_custom_call.1} parent=5 // pred_check_branch
        %146 = sbr.rel (%p143) target = $region12
      $region11: #{tpu_custom_call.1} parent=5 // pred_region
        %s147 = ssub.s32 %s13, 1
        // Predicated region
        $region13: #{tpu_custom_call.1} parent=11 // pred_check
          %p148 = pneg %p60
        $region14: #{tpu_custom_call.1} parent=11 // pred_check_branch
          %150 = sbr.rel (%p148) target = $region16
        $region15: #{tpu_custom_call.1} parent=11 // pred_region
          _
        $region16: #{tpu_custom_call.1} parent=11 // pred_fallthru
          _
        // Predicated region
        $region17: #{tpu_custom_call.1} parent=11 // pred_check
          %p151 = pneg %p107
        $region18: #{tpu_custom_call.1} parent=11 // pred_check_branch
          %153 = sbr.rel (%p151) target = $region20
        $region19: #{tpu_custom_call.1} parent=11 // pred_region
          _
        $region20: #{tpu_custom_call.1} parent=11 // pred_fallthru
          _
      $region12: #{tpu_custom_call.1} parent=5 // pred_fallthru
        _
      %p154 = scmp.lt.s32.totalorder %s13, 2
      // Predicated region
      $region21: #{tpu_custom_call.1} parent=5 // pred_check
        %p155 = pneg %p154
      $region22: #{tpu_custom_call.1} parent=5 // pred_check_branch
        %157 = sbr.rel (%p155) target = $region24
      $region23: #{tpu_custom_call.1} parent=5 // pred_region
        // Predicated region
        $region25: #{tpu_custom_call.1} parent=23 // pred_check
          %p158 = pneg %p33
        $region26: #{tpu_custom_call.1} parent=23 // pred_check_branch
          %160 = sbr.rel (%p158) target = $region28
        $region27: #{tpu_custom_call.1} parent=23 // pred_region
          %s161 = smul.u32 8, %s13
          %p162 = scmp.lt.s32.totalorder %s161, 15
          %s163 = scalar_select %p162, %s161, 15
          %s164 = smul.addr %s163, 8
          %s165 = scalar_lea.vmem %s0, %s164
          %s166 = smul.u32 8, %s13
        $region28: #{tpu_custom_call.1} parent=23 // pred_fallthru
          _
        // Predicated region
        $region29: #{tpu_custom_call.1} parent=23 // pred_check
          %p167 = pneg %p80
        $region30: #{tpu_custom_call.1} parent=23 // pred_check_branch
          %169 = sbr.rel (%p167) target = $region32
        $region31: #{tpu_custom_call.1} parent=23 // pred_region
          %s170 = smul.u32 8, %s13
          %p171 = scmp.lt.s32.totalorder %s170, 15
          %s172 = scalar_select %p171, %s170, 15
          %s173 = smul.addr %s172, 8
          %s174 = scalar_lea.vmem %s2, %s173
          %s175 = smul.u32 8, %s13
        $region32: #{tpu_custom_call.1} parent=23 // pred_fallthru
          _
      $region24: #{tpu_custom_call.1} parent=5 // pred_fallthru
        _
      %p176 = scmp.le.s32.totalorder 1, %s13
      %p177 = scmp.lt.s32.totalorder %s13, 3
      %p178 = pnand %p176, %p177
      %p179 = pneg %p178
      // Predicated region
      $region33: #{tpu_custom_call.1} parent=5 // pred_check
        _
      $region34: #{tpu_custom_call.1} parent=5 // pred_check_branch
        %181 = sbr.rel (%p178) target = $region36
      $region35: #{tpu_custom_call.1} parent=5 // pred_region
        %s182 = ssub.s32 %s13, 1
        %s183 = smul.u32 8, %s18
        %p184 = scmp.lt.s32.totalorder %s183, 15
        %s185 = scalar_select %p184, %s183, 15
        %s186 = smul.addr %s185, 8
        %s187 = scalar_lea.vmem %s0, %s186
        %p188 = pneg %p39
        %p189 = pneg %p36
        %p190 = pneg %p60
        %p191 = pneg %p57
        %s192 = smul.u32 8, %s18
        %p193 = scmp.lt.s32.totalorder %s192, 15
        %s194 = scalar_select %p193, %s192, 15
        %s195 = smul.addr %s194, 8
        %s196 = scalar_lea.vmem %s2, %s195
        %p197 = pneg %p86
        %p198 = pneg %p83
        %p199 = pneg %p107
        %p200 = pneg %p104
        %p201 = pneg %p133
        %p202 = pneg %p130
        %s203 = sand.u32 %s120, 1
        %s204 = scalar_lea.sflag [#allocation3], %s203
        %s205 = sand.u32 %s120, 1
        %s206 = smul.addr %s205, 64
        %s207 = scalar_lea.vmem [#allocation2], %s206
        %s208 = smul.u32 8, %s18
        %p209 = scmp.lt.s32.totalorder %s208, 15
        %s210 = scalar_select %p209, %s208, 15
        %s211 = smul.addr %s210, 8
        %s212 = scalar_lea.vmem %s0, %s211
        %s213 = smul.u32 8, %s18
        %s214 = smul.u32 8, %s18
        %p215 = scmp.lt.s32.totalorder %s214, 15
        %s216 = scalar_select %p215, %s214, 15
        %s217 = smul.addr %s216, 8
        %s218 = scalar_lea.vmem %s2, %s217
        %s219 = smul.u32 8, %s18
        %s220 = smul.u32 8, %s18
        %v221 = vld [vmem:[%s212] sm:$0xff]
        %v222 = vld [vmem:[%s212 + $0x8] sm:$0xff]
        %v223 = vld [vmem:[%s212 + $0x10] sm:$0xff]
        %v224 = vld [vmem:[%s212 + $0x18] sm:$0xff]
        %v225 = vld [vmem:[%s212 + $0x20] sm:$0xff]
        %v226 = vld [vmem:[%s212 + $0x28] sm:$0xff]
        %v227 = vld [vmem:[%s212 + $0x30] sm:$0xff]
        %v228 = vld [vmem:[%s212 + $0x38] sm:$0xff]
        %v229 = vld [vmem:[%s1] sm:$0xff]
        %v230 = vld [vmem:[%s1 + $0x8] sm:$0xff]
        %v231 = vld [vmem:[%s1 + $0x10] sm:$0xff]
        %v232 = vld [vmem:[%s1 + $0x18] sm:$0xff]
        %vm233 = vcmask 261120
        %v235 = vsel %vm233, %v221, 0
        %v238 = vsel %vm233, %v222, 0
        %v241 = vsel %vm233, %v223, 0
        %v244 = vsel %vm233, %v224, 0
        %v247 = vsel %vm233, %v225, 0
        %v250 = vsel %vm233, %v226, 0
        %v253 = vsel %vm233, %v227, 0
        %v256 = vsel %vm233, %v228, 0
        %258 = vmatprep.subr.mxu0 0.0
        %259 = vmatpush1.msra.mxu0 0.0
        %260 = vmatprep.subr.mxu0 0.0
        %261 = vmatpush1.msra.mxu0 0.0
        %262 = vmatprep.subr.mxu0 0.0
        %263 = vmatpush1.msra.mxu0 0.0
        %264 = vmatprep.subr.mxu0 0.0
        %265 = vmatpush1.msra.mxu0 0.0
        %266 = vmatprep.subr.mxu0 0.0
        %267 = vmatpush1.msra.mxu0 0.0
        %268 = vmatprep.subr.mxu0 0.0
        %269 = vmatpush1.msra.mxu0 0.0
        %270 = vmatprep.subr.mxu0 0.0
        %271 = vmatpush1.msra.mxu0 0.0
        %272 = vmatprep.subr.mxu0 0.0
        %273 = vmatpush1.msra.mxu0 0.0
        %274 = vmatprep.subr.mxu0 0.0
        %275 = vmatpush1.msra.mxu0 0.0
        %276 = vmatprep.subr.mxu0 0.0
        %277 = vmatpush1.msra.mxu0 0.0
        %278 = vmatprep.subr.mxu0 0.0
        %279 = vmatpush1.msra.mxu0 0.0
        %280 = vmatprep.subr.mxu0 0.0
        %281 = vmatpush1.msra.mxu0 0.0
        %282 = vmatprep.subr.mxu0 0.0
        %283 = vmatpush1.msra.mxu0 %v232
        %284 = vmatprep.subr.mxu0 0.0
        %285 = vmatpush1.msra.mxu0 %v231
        %286 = vmatprep.subr.mxu0 0.0
        %287 = vmatpush1.msra.mxu0 %v230
        %288 = vmatprep.subr.mxu0 0.0
        %289 = vmatpush1.msra.mxu0 %v229
        %290 = vmatprep.subr.mxu0 0.0
        %291 = vmatpush2.msra.mxu0 0.0
        %292 = vmatprep.subr.mxu0 0.0
        %293 = vmatpush2.msra.mxu0 0.0
        %294 = vmatprep.subr.mxu0 0.0
        %295 = vmatpush2.msra.mxu0 0.0
        %296 = vmatprep.subr.mxu0 0.0
        %297 = vmatpush2.msra.mxu0 0.0
        %298 = vmatprep.subr.mxu0 0.0
        %299 = vmatpush2.msra.mxu0 0.0
        %300 = vmatprep.subr.mxu0 0.0
        %301 = vmatpush2.msra.mxu0 0.0
        %302 = vmatprep.subr.mxu0 0.0
        %303 = vmatpush2.msra.mxu0 0.0
        %304 = vmatprep.subr.mxu0 0.0
        %305 = vmatpush2.msra.mxu0 0.0
        %306 = vmatprep.subr.mxu0 0.0
        %307 = vmatpush2.msra.mxu0 0.0
        %308 = vmatprep.subr.mxu0 0.0
        %309 = vmatpush2.msra.mxu0 0.0
        %310 = vmatprep.subr.mxu0 0.0
        %311 = vmatpush2.msra.mxu0 0.0
        %312 = vmatprep.subr.mxu0 0.0
        %313 = vmatpush2.msra.mxu0 0.0
        %314 = vmatprep.subr.mxu0 0.0
        %315 = vmatpush2.msra.mxu0 0.0
        %316 = vmatprep.subr.mxu0 0.0
        %317 = vmatpush2.msra.mxu0 0.0
        %318 = vmatprep.subr.mxu0 0.0
        %319 = vmatpush2.msra.mxu0 0.0
        %320 = vmatprep.subr.mxu0 0.0
        %321 = vmatpush2.msra.mxu0 0.0
        %322 = vmatprep.mubr.f32.mxu0 0.0
        %323 = vmatmul.mubr.f32.gmra.mxu0 %v235
        %v324 = vpop.f32.mrf.mxu0
        %v325 = vadd.f32 0.0, %v324
        %v326 = vpop.f32.mrf.mxu0
        %327 = vmatprep.mubr.f32.mxu0 0.0
        %328 = vmatmul.mubr.f32.gmra.mxu0 %v238
        %v329 = vpop.f32.mrf.mxu0
        %v330 = vadd.f32 0.0, %v329
        %v331 = vpop.f32.mrf.mxu0
        %332 = vmatprep.mubr.f32.mxu0 0.0
        %333 = vmatmul.mubr.f32.gmra.mxu0 %v241
        %v334 = vpop.f32.mrf.mxu0
        %v335 = vadd.f32 0.0, %v334
        %v336 = vpop.f32.mrf.mxu0
        %337 = vmatprep.mubr.f32.mxu0 0.0
        %338 = vmatmul.mubr.f32.gmra.mxu0 %v244
        %v339 = vpop.f32.mrf.mxu0
        %v340 = vadd.f32 0.0, %v339
        %v341 = vpop.f32.mrf.mxu0
        %342 = vmatprep.mubr.f32.mxu0 0.0
        %343 = vmatmul.mubr.f32.gmra.mxu0 %v247
        %v344 = vpop.f32.mrf.mxu0
        %v345 = vadd.f32 0.0, %v344
        %v346 = vpop.f32.mrf.mxu0
        %347 = vmatprep.mubr.f32.mxu0 0.0
        %348 = vmatmul.mubr.f32.gmra.mxu0 %v250
        %v349 = vpop.f32.mrf.mxu0
        %v350 = vadd.f32 0.0, %v349
        %v351 = vpop.f32.mrf.mxu0
        %352 = vmatprep.mubr.f32.mxu0 0.0
        %353 = vmatmul.mubr.f32.gmra.mxu0 %v253
        %v354 = vpop.f32.mrf.mxu0
        %v355 = vadd.f32 0.0, %v354
        %v356 = vpop.f32.mrf.mxu0
        %357 = vmatprep.mubr.f32.mxu0 0.0
        %358 = vmatmul.mubr.f32.gmra.mxu0 %v256
        %v359 = vpop.f32.mrf.mxu0
        %v360 = vadd.f32 0.0, %v359
        %v361 = vpop.f32.mrf.mxu0
        %362 = vdwg.mxu0
        %v363 = vld [vmem:[%s218] sm:$0xff]
        %v364 = vld [vmem:[%s218 + $0x8] sm:$0xff]
        %v365 = vld [vmem:[%s218 + $0x10] sm:$0xff]
        %v366 = vld [vmem:[%s218 + $0x18] sm:$0xff]
        %v367 = vld [vmem:[%s218 + $0x20] sm:$0xff]
        %v368 = vld [vmem:[%s218 + $0x28] sm:$0xff]
        %v369 = vld [vmem:[%s218 + $0x30] sm:$0xff]
        %v370 = vld [vmem:[%s218 + $0x38] sm:$0xff]
        %v371 = vld [vmem:[%s3] sm:$0x1]
        %373 = vset.pattern.permute.xlu0 0
        %374 = vperm.xlu0 %373, %v363
        %v375 = vpop.permute.xlu0 %374
        %378 = vset.pattern.permute.xlu0 0
        %379 = vperm.xlu0 %378, %v364
        %v380 = vpop.permute.xlu0 %379
        %383 = vset.pattern.permute.xlu0 0
        %384 = vperm.xlu0 %383, %v365
        %v385 = vpop.permute.xlu0 %384
        %388 = vset.pattern.permute.xlu0 0
        %389 = vperm.xlu0 %388, %v366
        %v390 = vpop.permute.xlu0 %389
        %393 = vset.pattern.permute.xlu0 0
        %394 = vperm.xlu0 %393, %v367
        %v395 = vpop.permute.xlu0 %394
        %398 = vset.pattern.permute.xlu0 0
        %399 = vperm.xlu0 %398, %v368
        %v400 = vpop.permute.xlu0 %399
        %403 = vset.pattern.permute.xlu0 0
        %404 = vperm.xlu0 %403, %v369
        %v405 = vpop.permute.xlu0 %404
        %408 = vset.pattern.permute.xlu0 0
        %409 = vperm.xlu0 %408, %v370
        %v410 = vpop.permute.xlu0 %409
        %v413 = vlaneseq
        %v414 = vshrl.u32 %v413, 7
        %v415 = vsub.s32 0, %v414
        %v416 = vrot.slane %v371, %v415
        %v418 = vadd.f32 %v375, %v416
        %v419 = vadd.f32 %v380, %v416
        %v420 = vadd.f32 %v385, %v416
        %v421 = vadd.f32 %v390, %v416
        %v422 = vadd.f32 %v395, %v416
        %v423 = vadd.f32 %v400, %v416
        %v424 = vadd.f32 %v405, %v416
        %v425 = vadd.f32 %v410, %v416
        %v426 = vmul.f32 %v325, 2.0
        %v427 = vmul.f32 %v330, 2.0
        %v428 = vmul.f32 %v335, 2.0
        %v429 = vmul.f32 %v340, 2.0
        %v430 = vmul.f32 %v345, 2.0
        %v431 = vmul.f32 %v350, 2.0
        %v432 = vmul.f32 %v355, 2.0
        %v433 = vmul.f32 %v360, 2.0
        %v434 = vsub.f32 %v418, %v426
        %v435 = vsub.f32 %v419, %v427
        %v436 = vsub.f32 %v420, %v428
        %v437 = vsub.f32 %v421, %v429
        %v438 = vsub.f32 %v422, %v430
        %v439 = vsub.f32 %v423, %v431
        %v440 = vsub.f32 %v424, %v432
        %v441 = vsub.f32 %v425, %v433
        %vm442 = vcmp.lt.f32.partialorder %v434, 32.69284
        %vm443 = vcmp.lt.f32.partialorder %v435, 32.69284
        %vm444 = vcmp.lt.f32.partialorder %v436, 32.69284
        %vm445 = vcmp.lt.f32.partialorder %v437, 32.69284
        %vm446 = vcmp.lt.f32.partialorder %v438, 32.69284
        %vm447 = vcmp.lt.f32.partialorder %v439, 32.69284
        %vm448 = vcmp.lt.f32.partialorder %v440, 32.69284
        %vm449 = vcmp.lt.f32.partialorder %v441, 32.69284
        %v450 = vsel %vm442, 1, 0
        %v451 = vsel %vm443, 1, 0
        %v452 = vsel %vm444, 1, 0
        %v453 = vsel %vm445, 1, 0
        %v454 = vsel %vm446, 1, 0
        %v455 = vsel %vm447, 1, 0
        %v456 = vsel %vm448, 1, 0
        %v457 = vsel %vm449, 1, 0
        %v458 = vcvt.s32.f32 %v450
        %v459 = vcvt.s32.f32 %v451
        %v460 = vcvt.s32.f32 %v452
        %v461 = vcvt.s32.f32 %v453
        %v462 = vcvt.s32.f32 %v454
        %v463 = vcvt.s32.f32 %v455
        %v464 = vcvt.s32.f32 %v456
        %v465 = vcvt.s32.f32 %v457
        %466 = vadd.xlane.f32.xlu0 %v458
        %v467 = vpop.xlane.xlu0 %466
        %468 = vadd.xlane.f32.xlu0 %v459
        %v469 = vpop.xlane.xlu0 %468
        %470 = vadd.xlane.f32.xlu0 %v460
        %v471 = vpop.xlane.xlu0 %470
        %472 = vadd.xlane.f32.xlu0 %v461
        %v473 = vpop.xlane.xlu0 %472
        %474 = vadd.xlane.f32.xlu0 %v462
        %v475 = vpop.xlane.xlu0 %474
        %476 = vadd.xlane.f32.xlu0 %v463
        %v477 = vpop.xlane.xlu0 %476
        %478 = vadd.xlane.f32.xlu0 %v464
        %v479 = vpop.xlane.xlu0 %478
        %480 = vadd.xlane.f32.xlu0 %v465
        %v481 = vpop.xlane.xlu0 %480
        %v482 = vadd.f32 %v467, 0.0
        %v483 = vadd.f32 %v469, 0.0
        %v484 = vadd.f32 %v471, 0.0
        %v485 = vadd.f32 %v473, 0.0
        %v486 = vadd.f32 %v475, 0.0
        %v487 = vadd.f32 %v477, 0.0
        %v488 = vadd.f32 %v479, 0.0
        %v489 = vadd.f32 %v481, 0.0
        %v490 = vrcp.pop %v482
        %v491 = vrcp.pop %v483
        %v492 = vrcp.pop %v484
        %v493 = vrcp.pop %v485
        %v494 = vrcp.pop %v486
        %v495 = vrcp.pop %v487
        %v496 = vrcp.pop %v488
        %v497 = vrcp.pop %v489
        %v498 = vmul.f32 %v458, %v490
        %v499 = vmul.f32 %v459, %v491
        %v500 = vmul.f32 %v460, %v492
        %v501 = vmul.f32 %v461, %v493
        %v502 = vmul.f32 %v462, %v494
        %v503 = vmul.f32 %v463, %v495
        %v504 = vmul.f32 %v464, %v496
        %v505 = vmul.f32 %v465, %v497
        %506 = vst [vmem:[%s207] sm:$0xff] %v498
        %507 = vst [vmem:[%s207 + $0x8] sm:$0xff] %v499
        %508 = vst [vmem:[%s207 + $0x10] sm:$0xff] %v500
        %509 = vst [vmem:[%s207 + $0x18] sm:$0xff] %v501
        %510 = vst [vmem:[%s207 + $0x20] sm:$0xff] %v502
        %511 = vst [vmem:[%s207 + $0x28] sm:$0xff] %v503
        %512 = vst [vmem:[%s207 + $0x30] sm:$0xff] %v504
        %513 = vst [vmem:[%s207 + $0x38] sm:$0xff] %v505
        %s514 = sand.u32 %s120, 1
        %s515 = scalar_lea.sflag [#allocation3], %s514
        %s516 = sand.u32 %s120, 1
        %s517 = smul.addr %s516, 64
        %s518 = scalar_lea.vmem [#allocation2], %s517
        // Predicated region
        $region37: #{tpu_custom_call.1} parent=35 // pred_check
          %p519 = pneg %p130
        $region38: #{tpu_custom_call.1} parent=35 // pred_check_branch
          %521 = sbr.rel (%p519) target = $region40
        $region39: #{tpu_custom_call.1} parent=35 // pred_region
          %s522 = smul.u32 8, %s18
          %s524 = ssub.s32 1024, 1024
          %525 = vsyncadd %s515, %s524
          %s526 = smul.addr %s522, 128
          %s527 = scalar_lea.hbm %s4, %s526
          %s528 = sshll.u32 %s518, 4
          %s529 = int_to_ptr.vmem [resolvable:$true] %s528
          %534 = dma.vmem_to_hbm [thread:$0]  %s529, 1024, %s527, %s515, 128, 128, 8
        $region40: #{tpu_custom_call.1} parent=35 // pred_fallthru
          _
      $region36: #{tpu_custom_call.1} parent=5 // pred_fallthru
        _
      %p535 = scmp.le.s32.totalorder 2, %s13
      // Predicated region
      $region41: #{tpu_custom_call.1} parent=5 // pred_check
        %p536 = pneg %p535
      $region42: #{tpu_custom_call.1} parent=5 // pred_check_branch
        %538 = sbr.rel (%p536) target = $region44
      $region43: #{tpu_custom_call.1} parent=5 // pred_region
        %s539 = ssub.s32 %s13, 2
        // Predicated region
        $region45: #{tpu_custom_call.1} parent=43 // pred_check
          %p540 = pneg %p136
        $region46: #{tpu_custom_call.1} parent=43 // pred_check_branch
          %542 = sbr.rel (%p540) target = $region48
        $region47: #{tpu_custom_call.1} parent=43 // pred_region
          %s543 = sand.u32 %s121, 1
          %s544 = scalar_lea.sflag [#allocation3], %s543
          %s545 = sand.u32 %s121, 1
          %s546 = smul.addr %s545, 64
          %s547 = scalar_lea.vmem [#allocation2], %s546
          %548 = dma.done %s544, 1024
        $region48: #{tpu_custom_call.1} parent=43 // pred_fallthru
          _
      $region44: #{tpu_custom_call.1} parent=5 // pred_fallthru
        _
    $region6: #{tpu_custom_call.1} parent=1 // loop_footer
      %s17 = sadd.s32 1, %s13
    $region7: #{tpu_custom_call.1} parent=1 // loop_footer_branch
      %12 = sbr.rel target = $region3
    $region8: #{tpu_custom_call.1} parent=1 // loop_exit
      _
    %549 = vsyncpa [#allocation3], 1
    %s550 = scalar_lea.sflag [#allocation3], 1
    %551 = vsyncpa %s550, 1

</llo_original>
